<compile_context>
chip_gen: v6e
topology: v6e:2x2x1
jax: 0.10.0
libtpu: 0.0.40
codegen_flags: <defaults>
</compile_context>

<pallas_src>
import jax
import jax.numpy as jnp
from jax.experimental import pallas as pl
from jax.experimental.pallas import tpu as pltpu


def dense_fc_kernel(x_ref, w1_ref, b1_ref, w2_ref, b2_ref, o_ref):
    # First linear: bf16 MXU matmul with f32 accumulation, then f32 bias + tanh (EUP).
    h1 = jnp.dot(x_ref[...], w1_ref[...], preferred_element_type=jnp.float32)
    h1 = jnp.tanh(h1 + b1_ref[...])
    # Second linear: cast the f32 activations down only for the matmul inputs.
    h2 = jnp.dot(h1.astype(w2_ref.dtype), w2_ref[...],
                 preferred_element_type=jnp.float32)
    h2 = jnp.tanh(h2 + b2_ref[...])
    o_ref[...] = h2.astype(o_ref.dtype)


def _round_up(n, m):
    return ((n + m - 1) // m) * m


def dense_fc(x, w1, b1, w2, b2, *, block_b=None, compute_dtype=jnp.bfloat16):
    """Fused DenseFC forward.

    x:  (B, in_dim)          w1: (H1, in_dim)  b1: (H1,)   [PyTorch (out, in) layout]
    w2: (H2, H1)             b2: (H2,)
    Returns (B, H2) in x.dtype.
    """
    B, in_dim = x.shape
    H1 = w1.shape[0]
    H2 = w2.shape[0]
    out_dtype = x.dtype
    f32 = jnp.float32

    # Lane-pad hidden/output dims to 128 multiples (lane-dense MXU tiles, unmasked
    # output stores). Sublane-pad / tile the batch in multiples of 8, up to 256 rows.
    H1p = _round_up(H1, 128)
    H2p = _round_up(H2, 128)
    if block_b is None:
        block_b = 256 if B >= 256 else _round_up(B, 8)
    block_b = max(8, _round_up(block_b, 8))
    Bp = _round_up(B, block_b)

    # Pre-transpose PyTorch (out, in) weights to (in, out) and zero-pad.
    # Matmul inputs in compute_dtype (bf16), biases kept in f32.
    w1_t = jnp.zeros((in_dim, H1p), compute_dtype).at[:, :H1].set(
        w1.T.astype(compute_dtype))
    w2_t = jnp.zeros((H1p, H2p), compute_dtype).at[:H1, :H2].set(
        w2.T.astype(compute_dtype))
    b1_row = jnp.zeros((1, H1p), f32).at[0, :H1].set(b1.astype(f32))
    b2_row = jnp.zeros((1, H2p), f32).at[0, :H2].set(b2.astype(f32))
    x_p = jnp.zeros((Bp, in_dim), compute_dtype).at[:B, :].set(
        x.astype(compute_dtype))

    grid = (Bp // block_b,)
    out = pl.pallas_call(
        dense_fc_kernel,
        out_shape=jax.ShapeDtypeStruct((Bp, H2p), out_dtype),
        grid_spec=pltpu.PrefetchScalarGridSpec(
            num_scalar_prefetch=0,
            grid=grid,
            in_specs=[
                pl.BlockSpec((block_b, in_dim), lambda i: (i, 0)),  # x tile (pipelined)
                pl.BlockSpec((in_dim, H1p), lambda i: (0, 0)),      # W1^T (resident)
                pl.BlockSpec((1, H1p), lambda i: (0, 0)),           # b1 (f32)
                pl.BlockSpec((H1p, H2p), lambda i: (0, 0)),         # W2^T (resident)
                pl.BlockSpec((1, H2p), lambda i: (0, 0)),           # b2 (f32)
            ],
            out_specs=pl.BlockSpec((block_b, H2p), lambda i: (i, 0)),
        ),
        compiler_params=pltpu.CompilerParams(
            dimension_semantics=("parallel",),      # batch tiles shard across TCs (v7x)
            vmem_limit_bytes=32 * 1024 * 1024,
        ),
    )(x_p, w1_t, b1_row, w2_t, b2_row)
    # Slice away batch / lane padding.
    return out[:B, :H2]


def init_dense_fc_params(key, in_dim, model_select=(200, 100), dtype=jnp.float32):
    """Deterministic init matching nn.Linear shapes: W (out, in), b (out,)."""
    h1, h2 = model_select
    k1, k2, k3, k4 = jax.random.split(key, 4)
    lim1 = 1.0 / jnp.sqrt(in_dim)
    lim2 = 1.0 / jnp.sqrt(h1)
    w1 = jax.random.uniform(k1, (h1, in_dim), dtype, -lim1, lim1)
    b1 = jax.random.uniform(k2, (h1,), dtype, -lim1, lim1)
    w2 = jax.random.uniform(k3, (h2, h1), dtype, -lim2, lim2)
    b2 = jax.random.uniform(k4, (h2,), dtype, -lim2, lim2)
    return w1, b1, w2, b2


if __name__ == "__main__":
    key = jax.random.PRNGKey(0)
    k_x, k_p = jax.random.split(key)

    B, in_dim = 8, 32
    model_select = (200, 100)

    x = jax.random.normal(k_x, (B, in_dim), dtype=jnp.float32)
    w1, b1, w2, b2 = init_dense_fc_params(k_p, in_dim, model_select)

    y = dense_fc(x, w1, b1, w2, b2)           # bf16 matmuls, f32 accumulation/tanh
    y = jax.block_until_ready(y)
    assert y.shape == (B, model_select[1])
    assert y.dtype == x.dtype

    # bf16-mirrored pure-JAX reference (matches the kernel's quantization points).
    xb = x.astype(jnp.bfloat16).astype(jnp.float32)
    w1b = w1.astype(jnp.bfloat16).astype(jnp.float32)
    w2b = w2.astype(jnp.bfloat16).astype(jnp.float32)
    h1_ref = jnp.tanh(xb @ w1b.T + b1)
    h1_ref = h1_ref.astype(jnp.bfloat16).astype(jnp.float32)
    ref_bf16 = jnp.tanh(h1_ref @ w2b.T + b2)
    assert jnp.allclose(y, ref_bf16, atol=2e-3, rtol=2e-3), "mismatch vs bf16 reference"

    # Loose check against the exact f32 module semantics.
    ref_f32 = jnp.tanh(jnp.tanh(x @ w1.T + b1) @ w2.T + b2)
    assert jnp.allclose(y, ref_f32, atol=3e-2, rtol=3e-2), "mismatch vs f32 reference"

    print("KERNEL_OK")
</pallas_src>

<mosaic_0001>
module attributes {stable_mosaic.version = 11 : i64} {
  func.func @dense_fc_kernel(%arg0: i32, %arg1: memref<8x32xbf16, #tpu.memory_space<vmem>>, %arg2: memref<32x256xbf16, #tpu.memory_space<vmem>>, %arg3: memref<1x256xf32, #tpu.memory_space<vmem>>, %arg4: memref<256x128xbf16, #tpu.memory_space<vmem>>, %arg5: memref<1x128xf32, #tpu.memory_space<vmem>>, %arg6: memref<8x128xf32, #tpu.memory_space<vmem>>) attributes {dimension_semantics = [#tpu.dimension_semantics<parallel>], iteration_bounds = array<i64: 1>, scalar_prefetch = 0 : i64, scratch_operands = 0 : i64, tpu.core_type = #tpu.core_type<tc>, window_params = [{transform_indices = @transform_0, window_bounds = array<i64: 8, 32>}, {pipeline_mode = #tpu.pipeline_mode<synchronous>, transform_indices = @transform_1, window_bounds = array<i64: 32, 256>}, {pipeline_mode = #tpu.pipeline_mode<synchronous>, transform_indices = @transform_2, window_bounds = array<i64: 1, 256>}, {pipeline_mode = #tpu.pipeline_mode<synchronous>, transform_indices = @transform_3, window_bounds = array<i64: 256, 128>}, {pipeline_mode = #tpu.pipeline_mode<synchronous>, transform_indices = @transform_4, window_bounds = array<i64: 1, 128>}, {transform_indices = @transform_5, window_bounds = array<i64: 8, 128>}]} {
    %c0 = arith.constant 0 : index
    %c0_0 = arith.constant 0 : index
    %0 = vector.load %arg1[%c0, %c0_0] : memref<8x32xbf16, #tpu.memory_space<vmem>>, vector<8x32xbf16>
    %c0_1 = arith.constant 0 : index
    %c0_2 = arith.constant 0 : index
    %1 = vector.load %arg2[%c0_1, %c0_2] : memref<32x256xbf16, #tpu.memory_space<vmem>>, vector<32x256xbf16>
    %cst = arith.constant dense<0.000000e+00> : vector<8x256xf32>
    %2 = tpu.matmul %0, %1, %cst {dimension_numbers = #tpu.dot_dimension_numbers<[1], [0], [0], [1], [0, 0, 1, 1], [], []>} : vector<8x32xbf16>, vector<32x256xbf16>, vector<8x256xf32> -> vector<8x256xf32>
    %c0_3 = arith.constant 0 : index
    %c0_4 = arith.constant 0 : index
    %3 = vector.load %arg3[%c0_3, %c0_4] : memref<1x256xf32, #tpu.memory_space<vmem>>, vector<1x256xf32>
    %4 = vector.broadcast %3 : vector<1x256xf32> to vector<8x256xf32>
    %5 = arith.addf %2, %4 : vector<8x256xf32>
    %6 = math.tanh %5 : vector<8x256xf32>
    %7 = arith.truncf %6 : vector<8x256xf32> to vector<8x256xbf16>
    %c0_5 = arith.constant 0 : index
    %c0_6 = arith.constant 0 : index
    %8 = vector.load %arg4[%c0_5, %c0_6] : memref<256x128xbf16, #tpu.memory_space<vmem>>, vector<256x128xbf16>
    %cst_7 = arith.constant dense<0.000000e+00> : vector<8x128xf32>
    %9 = tpu.matmul %7, %8, %cst_7 {dimension_numbers = #tpu.dot_dimension_numbers<[1], [0], [0], [1], [0, 0, 1, 1], [], []>} : vector<8x256xbf16>, vector<256x128xbf16>, vector<8x128xf32> -> vector<8x128xf32>
    %c0_8 = arith.constant 0 : index
    %c0_9 = arith.constant 0 : index
    %10 = vector.load %arg5[%c0_8, %c0_9] : memref<1x128xf32, #tpu.memory_space<vmem>>, vector<1x128xf32>
    %11 = vector.broadcast %10 : vector<1x128xf32> to vector<8x128xf32>
    %12 = arith.addf %9, %11 : vector<8x128xf32>
    %13 = math.tanh %12 : vector<8x128xf32>
    %c0_10 = arith.constant 0 : index
    %c0_11 = arith.constant 0 : index
    %14 = vector.load %arg6[%c0_10, %c0_11] : memref<8x128xf32, #tpu.memory_space<vmem>>, vector<8x128xf32>
    tpu.vector_store %arg6[%c0_10, %c0_11], %13 {strides = array<i32>} : memref<8x128xf32, #tpu.memory_space<vmem>>, vector<8x128xf32>,
    return
  }
  func.func @transform_0(%arg0: i32) -> (i32, i32) {
    %c0_i32 = arith.constant 0 : i32
    %c0_i32_0 = arith.constant 0 : i32
    return %arg0, %c0_i32 : i32, i32
  }
  func.func @transform_1(%arg0: i32) -> (i32, i32) {
    %c0_i32 = arith.constant 0 : i32
    %c0_i32_0 = arith.constant 0 : i32
    %c0_i32_1 = arith.constant 0 : i32
    return %c0_i32, %c0_i32_0 : i32, i32
  }
  func.func @transform_2(%arg0: i32) -> (i32, i32) {
    %c0_i32 = arith.constant 0 : i32
    %c0_i32_0 = arith.constant 0 : i32
    %c0_i32_1 = arith.constant 0 : i32
    return %c0_i32, %c0_i32_0 : i32, i32
  }
  func.func @transform_3(%arg0: i32) -> (i32, i32) {
    %c0_i32 = arith.constant 0 : i32
    %c0_i32_0 = arith.constant 0 : i32
    %c0_i32_1 = arith.constant 0 : i32
    return %c0_i32, %c0_i32_0 : i32, i32
  }
  func.func @transform_4(%arg0: i32) -> (i32, i32) {
    %c0_i32 = arith.constant 0 : i32
    %c0_i32_0 = arith.constant 0 : i32
    %c0_i32_1 = arith.constant 0 : i32
    return %c0_i32, %c0_i32_0 : i32, i32
  }
  func.func @transform_5(%arg0: i32) -> (i32, i32) {
    %c0_i32 = arith.constant 0 : i32
    %c0_i32_0 = arith.constant 0 : i32
    return %arg0, %c0_i32 : i32, i32
  }
}

</mosaic_0001>

<llo_original>
// kernel: tpu_custom_call.1
$region0: #{tpu_custom_call.1}
  #allocation0 [shape = 'u32[]', space=smem, size = 0x4, offset = 0x4, fixed_abs, tag = 'smem constant byte address 0x4 - core index']
  #allocation1 [shape = 'u32[144,128]{1,0:T(1,128)}', space=vmem, size = 0x12000, scoped, tag = 'internal scratch']
  %s0 = inlined_call_operand.hbm [shape: bf16[8,32], index: 0, kind: input, shape index: {}]
  %s1 = inlined_call_operand.hbm [shape: bf16[32,256], index: 1, kind: input, shape index: {}]
  %s2 = inlined_call_operand.vmem [shape: f32[1,256], index: 2, kind: input, shape index: {}]
  %s3 = inlined_call_operand.hbm [shape: bf16[256,128], index: 3, kind: input, shape index: {}]
  %s4 = inlined_call_operand.vmem [shape: f32[1,128], index: 4, kind: input, shape index: {}]
  %s5 = inlined_call_operand.hbm [shape: f32[8,128], index: 5, kind: output, shape index: {}]
  %s6 = sld [smem:[#allocation0]]
  $region42: #{tpu_custom_call.1} parent=0
    _
  %s8 = ssub.s32 1, %s6
  %s9 = scalar_select 0, %s8, %s6
  $region1: #{tpu_custom_call.1} parent=0
    #allocation2 [shape = 'u8[2048]{0}', space=vmem, size = 0x800, scoped, tag = 'input window, operand 0, single buffered']
    #allocation3 [shape = 's32[1]{0}', space=sflag, size = 0x4, scoped, tag = 'scoped memory for tpu_custom_call.1']
    #allocation4 [shape = 's32[1]{0}', space=sflag, size = 0x4, scoped, tag = 'scoped memory for tpu_custom_call.1']
    #allocation5 [shape = 'u8[16384]{0}', space=vmem, size = 0x4000, scoped, tag = 'input window, operand 1, single buffered']
    #allocation6 [shape = 's32[1]{0}', space=sflag, size = 0x4, scoped, tag = 'scoped memory for tpu_custom_call.1']
    #allocation7 [shape = 'u8[65536]{0}', space=vmem, size = 0x10000, scoped, tag = 'input window, operand 3, single buffered']
    #allocation8 [shape = 'u8[4096]{0}', space=vmem, size = 0x1000, scoped, tag = 'output window, operand 0, single buffered']
    %10 = vsyncpa [#allocation3], 0
    %11 = vsyncpa [#allocation6], 0
    %12 = vsyncpa [#allocation4], 0
    // Predicated region
    $region2: #{tpu_custom_call.1} parent=1 // pred_check
      _
    $region3: #{tpu_custom_call.1} parent=1 // pred_check_branch
      %14 = sbr.rel (0) target = $region5
    $region4: #{tpu_custom_call.1} parent=1 // pred_region
      %s16 = ssub.s32 64, 64
      %17 = vsyncadd [#allocation3], %s16
      %s19 = sshll.u32 [#allocation2], 4
      %s20 = int_to_ptr.vmem [resolvable:$true] %s19
      %22 = dma.hbm_to_vmem [thread:$0]  %s0, 64, %s20, [#allocation3]
    $region5: #{tpu_custom_call.1} parent=1 // pred_fallthru
      _
    // Predicated region
    $region6: #{tpu_custom_call.1} parent=1 // pred_check
      _
    $region7: #{tpu_custom_call.1} parent=1 // pred_check_branch
      %24 = sbr.rel (0) target = $region9
    $region8: #{tpu_custom_call.1} parent=1 // pred_region
      %s26 = ssub.s32 512, 512
      %27 = vsyncadd [#allocation6], %s26
      %s28 = sshll.u32 [#allocation5], 4
      %s29 = int_to_ptr.vmem [resolvable:$true] %s28
      %34 = dma.hbm_to_vmem [thread:$0]  %s1, 512, %s29, [#allocation6], 128, 128, 8
    $region9: #{tpu_custom_call.1} parent=1 // pred_fallthru
      _
    // Predicated region
    $region10: #{tpu_custom_call.1} parent=1 // pred_check
      _
    $region11: #{tpu_custom_call.1} parent=1 // pred_check_branch
      %36 = sbr.rel (0) target = $region13
    $region12: #{tpu_custom_call.1} parent=1 // pred_region
      _
    $region13: #{tpu_custom_call.1} parent=1 // pred_fallthru
      _
    // Predicated region
    $region14: #{tpu_custom_call.1} parent=1 // pred_check
      _
    $region15: #{tpu_custom_call.1} parent=1 // pred_check_branch
      %38 = sbr.rel (0) target = $region17
    $region16: #{tpu_custom_call.1} parent=1 // pred_region
      %s40 = ssub.s32 2048, 2048
      %41 = vsyncadd [#allocation6], %s40
      %s42 = sshll.u32 [#allocation7], 4
      %s43 = int_to_ptr.vmem [resolvable:$true] %s42
      %48 = dma.hbm_to_vmem [thread:$0]  %s3, 2048, %s43, [#allocation6], 64, 64, 4
    $region17: #{tpu_custom_call.1} parent=1 // pred_fallthru
      _
    // Predicated region
    $region18: #{tpu_custom_call.1} parent=1 // pred_check
      _
    $region19: #{tpu_custom_call.1} parent=1 // pred_check_branch
      %50 = sbr.rel (0) target = $region21
    $region20: #{tpu_custom_call.1} parent=1 // pred_region
      _
    $region21: #{tpu_custom_call.1} parent=1 // pred_fallthru
      _
    // Predicated region
    $region22: #{tpu_custom_call.1} parent=1 // pred_check
      _
    $region23: #{tpu_custom_call.1} parent=1 // pred_check_branch
      %52 = sbr.rel (0) target = $region25
    $region24: #{tpu_custom_call.1} parent=1 // pred_region
      %53 = dma.done [#allocation3], 64
    $region25: #{tpu_custom_call.1} parent=1 // pred_fallthru
      _
    // Predicated region
    $region26: #{tpu_custom_call.1} parent=1 // pred_check
      _
    $region27: #{tpu_custom_call.1} parent=1 // pred_check_branch
      %55 = sbr.rel (0) target = $region29
    $region28: #{tpu_custom_call.1} parent=1 // pred_region
      %56 = dma.done [#allocation6], 512
    $region29: #{tpu_custom_call.1} parent=1 // pred_fallthru
      _
    // Predicated region
    $region30: #{tpu_custom_call.1} parent=1 // pred_check
      _
    $region31: #{tpu_custom_call.1} parent=1 // pred_check_branch
      %58 = sbr.rel (0) target = $region33
    $region32: #{tpu_custom_call.1} parent=1 // pred_region
      %59 = dma.done [#allocation6], 2048
    $region33: #{tpu_custom_call.1} parent=1 // pred_fallthru
      _
    %v61 = vld [vmem:[#allocation2] sm:$0xf]
    %v62 = vld [vmem:[#allocation5] sm:$0xff]
    %v63 = vld [vmem:[#allocation5 + $0x8] sm:$0xff]
    %v64 = vld [vmem:[#allocation5 + $0x10] sm:$0xff]
    %v65 = vld [vmem:[#allocation5 + $0x18] sm:$0xff]
    %v66 = vld [vmem:[%s2] sm:$0x3]
    %v68 = vlaneseq
    %v69 = vshrl.u32 %v68, 7
    %v70 = vsub.s32 0, %v69
    %v71 = vrot.slane %v66, %v70
    %v72 = vlaneseq
    %v73 = vshrl.u32 %v72, 7
    %v74 = vsub.s32 1, %v73
    %v75 = vrot.slane %v66, %v74
    %v82 = vunpack.c.l.b16 %v62
    %v83 = vunpack.c.h.b16 %v62
    %v84 = vunpack.c.l.b16 %v63
    %v85 = vunpack.c.h.b16 %v63
    %v86 = vunpack.c.l.b16 %v64
    %v87 = vunpack.c.h.b16 %v64
    %v88 = vunpack.c.l.b16 %v65
    %v89 = vunpack.c.h.b16 %v65
    %v90 = vpack.c.b16 %v84, %v82
    %v91 = vpack.c.b16 %v85, %v83
    %v92 = vpack.c.b16 %v88, %v86
    %v93 = vpack.c.b16 %v89, %v87
    %vm98 = vcmask 261120
    %v100 = vsel %vm98, %v61, 0
    %102 = vmatprep.subr.bf16.mxu0 0
    %103 = vmatpush1.bf16.msra.mxu0 0
    %104 = vmatprep.subr.bf16.mxu0 0
    %105 = vmatpush1.bf16.msra.mxu0 0
    %106 = vmatprep.subr.bf16.mxu0 0
    %107 = vmatpush1.bf16.msra.mxu0 0
    %108 = vmatprep.subr.bf16.mxu0 0
    %109 = vmatpush1.bf16.msra.mxu0 0
    %110 = vmatprep.subr.bf16.mxu0 0
    %111 = vmatpush1.bf16.msra.mxu0 0
    %112 = vmatprep.subr.bf16.mxu0 0
    %113 = vmatpush1.bf16.msra.mxu0 0
    %114 = vmatprep.subr.bf16.mxu0 %v93
    %115 = vmatpush1.bf16.msra.mxu0 %v92
    %116 = vmatprep.subr.bf16.mxu0 %v91
    %117 = vmatpush1.bf16.msra.mxu0 %v90
    %118 = vmatprep.subr.bf16.mxu0 0
    %119 = vmatpush2.bf16.msra.mxu0 0
    %120 = vmatprep.subr.bf16.mxu0 0
    %121 = vmatpush2.bf16.msra.mxu0 0
    %122 = vmatprep.subr.bf16.mxu0 0
    %123 = vmatpush2.bf16.msra.mxu0 0
    %124 = vmatprep.subr.bf16.mxu0 0
    %125 = vmatpush2.bf16.msra.mxu0 0
    %126 = vmatprep.subr.bf16.mxu0 0
    %127 = vmatpush2.bf16.msra.mxu0 0
    %128 = vmatprep.subr.bf16.mxu0 0
    %129 = vmatpush2.bf16.msra.mxu0 0
    %130 = vmatprep.subr.bf16.mxu0 0
    %131 = vmatpush2.bf16.msra.mxu0 0
    %132 = vmatprep.subr.bf16.mxu0 0
    %133 = vmatpush2.bf16.msra.mxu0 0
    %134 = vmatprep.mubr.bf16.mxu0 0
    %135 = vmatmul.mubr.bf16.gmra.mxu0 %v100
    %v136 = vpop.f32.mrf.mxu0
    %v137 = vadd.f32 %v71, %v136
    %v138 = vpop.f32.mrf.mxu0
    %v139 = vadd.f32 %v75, %v138
    %v140 = vpop.f32.mrf.mxu0
    %v141 = vpop.f32.mrf.mxu0
    %142 = vdwg.mxu0
    %v143 = vtanh.pop %v137
    %v144 = vtanh.pop %v139
    %v145 = vpack.c.bf16 %v143, %v143
    %v146 = vpack.c.bf16 %v144, %v144
    %v147 = vld [vmem:[#allocation7] sm:$0xf]
    %v148 = vld [vmem:[#allocation7 + $0x4] sm:$0xf]
    %v149 = vld [vmem:[#allocation7 + $0x8] sm:$0xf]
    %v150 = vld [vmem:[#allocation7 + $0xc] sm:$0xf]
    %v151 = vld [vmem:[#allocation7 + $0x10] sm:$0xf]
    %v152 = vld [vmem:[#allocation7 + $0x14] sm:$0xf]
    %v153 = vld [vmem:[#allocation7 + $0x18] sm:$0xf]
    %v154 = vld [vmem:[#allocation7 + $0x1c] sm:$0xf]
    %v155 = vld [vmem:[#allocation7 + $0x20] sm:$0xf]
    %v156 = vld [vmem:[#allocation7 + $0x24] sm:$0xf]
    %v157 = vld [vmem:[#allocation7 + $0x28] sm:$0xf]
    %v158 = vld [vmem:[#allocation7 + $0x2c] sm:$0xf]
    %v159 = vld [vmem:[#allocation7 + $0x30] sm:$0xf]
    %v160 = vld [vmem:[#allocation7 + $0x34] sm:$0xf]
    %v161 = vld [vmem:[#allocation7 + $0x38] sm:$0xf]
    %v162 = vld [vmem:[#allocation7 + $0x3c] sm:$0xf]
    %v163 = vld [vmem:[#allocation7 + $0x40] sm:$0xf]
    %v164 = vld [vmem:[#allocation7 + $0x44] sm:$0xf]
    %v165 = vld [vmem:[#allocation7 + $0x48] sm:$0xf]
    %v166 = vld [vmem:[#allocation7 + $0x4c] sm:$0xf]
    %v167 = vld [vmem:[#allocation7 + $0x50] sm:$0xf]
    %v168 = vld [vmem:[#allocation7 + $0x54] sm:$0xf]
    %v169 = vld [vmem:[#allocation7 + $0x58] sm:$0xf]
    %v170 = vld [vmem:[#allocation7 + $0x5c] sm:$0xf]
    %v171 = vld [vmem:[#allocation7 + $0x60] sm:$0xf]
    %v172 = vld [vmem:[#allocation7 + $0x64] sm:$0xf]
    %v173 = vld [vmem:[#allocation7 + $0x68] sm:$0xf]
    %v174 = vld [vmem:[#allocation7 + $0x6c] sm:$0xf]
    %v175 = vld [vmem:[#allocation7 + $0x70] sm:$0xf]
    %v176 = vld [vmem:[#allocation7 + $0x74] sm:$0xf]
    %v177 = vld [vmem:[#allocation7 + $0x78] sm:$0xf]
    %v178 = vld [vmem:[#allocation7 + $0x7c] sm:$0xf]
    %v179 = vld [vmem:[%s4] sm:$0x1]
    %v181 = vlaneseq
    %v182 = vshrl.u32 %v181, 7
    %v183 = vsub.s32 0, %v182
    %v184 = vrot.slane %v179, %v183
    %v218 = vunpack.c.l.b16 %v147
    %v219 = vunpack.c.l.b16 %v148
    %v220 = vunpack.c.l.b16 %v149
    %v221 = vunpack.c.l.b16 %v150
    %v222 = vunpack.c.l.b16 %v151
    %v223 = vunpack.c.l.b16 %v152
    %v224 = vunpack.c.l.b16 %v153
    %v225 = vunpack.c.l.b16 %v154
    %v226 = vunpack.c.l.b16 %v155
    %v227 = vunpack.c.l.b16 %v156
    %v228 = vunpack.c.l.b16 %v157
    %v229 = vunpack.c.l.b16 %v158
    %v230 = vunpack.c.l.b16 %v159
    %v231 = vunpack.c.l.b16 %v160
    %v232 = vunpack.c.l.b16 %v161
    %v233 = vunpack.c.l.b16 %v162
    %v234 = vunpack.c.l.b16 %v163
    %v235 = vunpack.c.l.b16 %v164
    %v236 = vunpack.c.l.b16 %v165
    %v237 = vunpack.c.l.b16 %v166
    %v238 = vunpack.c.l.b16 %v167
    %v239 = vunpack.c.l.b16 %v168
    %v240 = vunpack.c.l.b16 %v169
    %v241 = vunpack.c.l.b16 %v170
    %v242 = vunpack.c.l.b16 %v171
    %v243 = vunpack.c.l.b16 %v172
    %v244 = vunpack.c.l.b16 %v173
    %v245 = vunpack.c.l.b16 %v174
    %v246 = vunpack.c.l.b16 %v175
    %v247 = vunpack.c.l.b16 %v176
    %v248 = vunpack.c.l.b16 %v177
    %v249 = vunpack.c.l.b16 %v178
    %v250 = vpack.c.b16 %v219, %v218
    %v251 = vpack.c.b16 %v221, %v220
    %v252 = vpack.c.b16 %v223, %v222
    %v253 = vpack.c.b16 %v225, %v224
    %v254 = vpack.c.b16 %v227, %v226
    %v255 = vpack.c.b16 %v229, %v228
    %v256 = vpack.c.b16 %v231, %v230
    %v257 = vpack.c.b16 %v233, %v232
    %v258 = vpack.c.b16 %v235, %v234
    %v259 = vpack.c.b16 %v237, %v236
    %v260 = vpack.c.b16 %v239, %v238
    %v261 = vpack.c.b16 %v241, %v240
    %v262 = vpack.c.b16 %v243, %v242
    %v263 = vpack.c.b16 %v245, %v244
    %v264 = vpack.c.b16 %v247, %v246
    %v265 = vpack.c.b16 %v249, %v248
    %282 = vmatprep.subr.bf16.mxu0 0
    %283 = vmatpush1.bf16.msra.mxu0 %v257
    %284 = vmatprep.subr.bf16.mxu0 0
    %285 = vmatpush1.bf16.msra.mxu0 %v256
    %286 = vmatprep.subr.bf16.mxu0 0
    %287 = vmatpush1.bf16.msra.mxu0 %v255
    %288 = vmatprep.subr.bf16.mxu0 0
    %289 = vmatpush1.bf16.msra.mxu0 %v254
    %290 = vmatprep.subr.bf16.mxu0 0
    %291 = vmatpush1.bf16.msra.mxu0 %v253
    %292 = vmatprep.subr.bf16.mxu0 0
    %293 = vmatpush1.bf16.msra.mxu0 %v252
    %294 = vmatprep.subr.bf16.mxu0 0
    %295 = vmatpush1.bf16.msra.mxu0 %v251
    %296 = vmatprep.subr.bf16.mxu0 0
    %297 = vmatpush1.bf16.msra.mxu0 %v250
    %298 = vmatprep.subr.bf16.mxu0 0
    %299 = vmatpush2.bf16.msra.mxu0 %v265
    %300 = vmatprep.subr.bf16.mxu0 0
    %301 = vmatpush2.bf16.msra.mxu0 %v264
    %302 = vmatprep.subr.bf16.mxu0 0
    %303 = vmatpush2.bf16.msra.mxu0 %v263
    %304 = vmatprep.subr.bf16.mxu0 0
    %305 = vmatpush2.bf16.msra.mxu0 %v262
    %306 = vmatprep.subr.bf16.mxu0 0
    %307 = vmatpush2.bf16.msra.mxu0 %v261
    %308 = vmatprep.subr.bf16.mxu0 0
    %309 = vmatpush2.bf16.msra.mxu0 %v260
    %310 = vmatprep.subr.bf16.mxu0 0
    %311 = vmatpush2.bf16.msra.mxu0 %v259
    %312 = vmatprep.subr.bf16.mxu0 0
    %313 = vmatpush2.bf16.msra.mxu0 %v258
    %314 = vmatprep.mubr.bf16.mxu0 %v146
    %315 = vmatmul.mubr.bf16.gmra.mxu0 %v145
    %v316 = vpop.f32.mrf.mxu0
    %v317 = vadd.f32 %v184, %v316
    %v318 = vpop.f32.mrf.mxu0
    %v319 = vpop.f32.mrf.mxu0
    %v320 = vpop.f32.mrf.mxu0
    %321 = vdwg.mxu0
    %v322 = vtanh.pop %v317
    %323 = vst [vmem:[#allocation8] sm:$0xff] %v322
    // Predicated region
    $region34: #{tpu_custom_call.1} parent=1 // pred_check
      _
    $region35: #{tpu_custom_call.1} parent=1 // pred_check_branch
      %325 = sbr.rel (0) target = $region37
    $region36: #{tpu_custom_call.1} parent=1 // pred_region
      %s327 = ssub.s32 128, 128
      %328 = vsyncadd [#allocation4], %s327
      %s330 = sshll.u32 [#allocation8], 4
      %s331 = int_to_ptr.vmem [resolvable:$true] %s330
      %333 = dma.vmem_to_hbm [thread:$0]  %s331, 128, %s5, [#allocation4]
    $region37: #{tpu_custom_call.1} parent=1 // pred_fallthru
      _
    // Predicated region
    $region38: #{tpu_custom_call.1} parent=1 // pred_check
      _
    $region39: #{tpu_custom_call.1} parent=1 // pred_check_branch
      %335 = sbr.rel (0) target = $region41
    $region40: #{tpu_custom_call.1} parent=1 // pred_region
      %336 = dma.done [#allocation4], 128
    $region41: #{tpu_custom_call.1} parent=1 // pred_fallthru
      _
    %337 = vsyncpa [#allocation3], 1
    %338 = vsyncpa [#allocation6], 1
    %339 = vsyncpa [#allocation4], 1

</llo_original>
